<compile_context>
chip_gen: v6e
topology: v6e:2x2x1
jax: 0.10.0
libtpu: 0.0.40
codegen_flags: <defaults>
</compile_context>

<pallas_src>
import math

import jax
import jax.numpy as jnp
from jax.experimental import pallas as pl
from jax.experimental.pallas import tpu as pltpu


def _round_up(x, m):
    return ((x + m - 1) // m) * m


def _ceil_div(a, b):
    return -(-a // b)


def _fused_heads_kernel(x_ref, w_ref, b_ref, o_ref):
    """One batch tile of the fused multi-head projection.

    x_ref: [TB, H]      native input dtype (e.g. f32) -- cast in-register below
    w_ref: [H, D_pad]   compute dtype (bf16)  -- all head weights concatenated, lane-padded
    b_ref: [1, D_pad]   f32                   -- all head biases concatenated, lane-padded
    o_ref: [TB, D_pad]  out dtype (bf16)
    """
    x = x_ref[...].astype(w_ref.dtype)                       # in-kernel cast (no wrapper pass)
    y = jnp.dot(x, w_ref[...], preferred_element_type=jnp.float32)
    y = y + b_ref[...]                                       # single bias broadcast per tile
    o_ref[...] = y.astype(o_ref.dtype)


class CompositeHeadPallas:
    """JAX/Pallas equivalent of CompositeHead with Linear heads, fused into one kernel."""

    def __init__(self, head_dims, hidden_dim, key, *,
                 compute_dtype=jnp.bfloat16, out_dtype=jnp.bfloat16,
                 min_pallas_rows=64, max_rows_per_tile=1024):
        self.head_names = list(head_dims.keys())
        self.head_dims = dict(head_dims)
        self.hidden_dim = hidden_dim
        self.input_shape = (hidden_dim,)
        self.compute_dtype = compute_dtype
        self.out_dtype = out_dtype
        self.min_pallas_rows = min_pallas_rows
        self.max_rows_per_tile = max_rows_per_tile

        # Per-head f32 "master" params (mirror nn.Linear default init).
        self.params = {}
        bound = 1.0 / math.sqrt(hidden_dim)
        for name, d_out in head_dims.items():
            key, wk, bk = jax.random.split(key, 3)
            w = jax.random.uniform(wk, (hidden_dim, d_out), jnp.float32, -bound, bound)
            b = jax.random.uniform(bk, (1, d_out), jnp.float32, -bound, bound)
            self.params[name] = (w, b)

        # Fused parameters (concat along the output dim).
        d_total = sum(head_dims.values())
        self.d_total = d_total
        self.d_pad = max(_round_up(d_total, 128), 128)
        # f32 unpadded fused copy for the small-batch fast path.
        self.w_cat = jnp.concatenate([self.params[n][0] for n in self.head_names], axis=1)
        self.b_cat = jnp.concatenate([self.params[n][1] for n in self.head_names], axis=1)
        # Lane-padded, compute-dtype fused copy for the Pallas path.
        pad = self.d_pad - d_total
        self.w_fused = jnp.pad(self.w_cat, ((0, 0), (0, pad))).astype(compute_dtype)
        self.b_fused = jnp.pad(self.b_cat, ((0, 0), (0, pad))).astype(jnp.float32)

        # Column offsets for slicing the fused output back into per-head outputs.
        self.offsets = []
        off = 0
        for n in self.head_names:
            self.offsets.append(off)
            off += head_dims[n]

    # ------------------------------------------------------------------ helpers
    def _split(self, y_full, batch):
        out = {}
        for name, off in zip(self.head_names, self.offsets):
            d = self.head_dims[name]
            out[name] = y_full[:batch, off:off + d]
        return out

    @staticmethod
    def _vmem_capacity():
        try:
            info = pltpu.get_tpu_info()
            cap = int(getattr(info, "vmem_capacity_bytes", 0))
        except Exception:
            cap = 0
        if cap <= 0:
            cap = 64 << 20  # conservative fallback: valid on every generation (v7x floor)
        return cap

    # ------------------------------------------------------------------ forward
    def __call__(self, x):
        B, H = x.shape
        assert H == self.hidden_dim

        # Tiny-batch fast path: fixed pallas_call + pipeline prologue overhead (us-scale)
        # dominates one small matmul on every generation; XLA's fused dot is faster here.
        if B < self.min_pallas_rows:
            y = (x @ self.w_cat + self.b_cat).astype(self.out_dtype)
            return self._split(y, B)

        D_pad = self.d_pad
        cdt = jnp.dtype(self.compute_dtype).itemsize
        odt = jnp.dtype(self.out_dtype).itemsize
        xdt = jnp.dtype(x.dtype).itemsize

        # ---- generation-aware VMEM budget (v5e/v6e: 128 MiB, v7x: 64 MiB physical) ----
        cap = int(self._vmem_capacity() * 0.85)   # leave headroom for compiler scratch/sems

        x_row = H * xdt                   # x stays in native dtype in HBM (cast in-kernel)
        o_row = D_pad * odt
        w_bytes = H * D_pad * cdt
        b_bytes = D_pad * 4
        # Resident fused weights/bias; BlockSpec double-buffers them even with a constant
        # index_map, so budget 2x (see pl.Buffered(1) note at top of file).
        resident = 2 * (w_bytes + b_bytes)
        margin = 2 << 20

        if resident + 2 * 8 * (x_row + o_row) + margin > cap:
            raise NotImplementedError(
                "Fused head weights do not fit in VMEM; add a second 'parallel' grid axis "
                "tiling the output (D_pad) dimension before resorting to a K-reduction over H.")

        # ---- batch tiling: size TB from the batch itself (no rounding up to a fixed 512) ----
        tb_cap = (cap - resident - margin) // (2 * (x_row + o_row))
        TB_max = max(min(self.max_rows_per_tile, (tb_cap // 8) * 8), 8)
        if B <= TB_max:
            # Single tile: block shape == full array dims, so no row padding needed at all.
            n_tiles, TB, B_pad = 1, B, B
        else:
            n_tiles = _ceil_div(B, TB_max)
            if n_tiles % 2:          # even tile count -> clean 2-TC split on v7x (no-op on 1-TC)
                n_tiles += 1
            TB = _round_up(_ceil_div(B, n_tiles), 8)
            B_pad = TB * n_tiles

        x_p = x if B_pad == B else jnp.pad(x, ((0, B_pad - B), (0, 0)))

        vmem_needed = 2 * TB * (x_row + o_row) + resident
        vmem_limit = int(min(max(vmem_needed + (4 << 20), 32 << 20), cap))

        cost = pl.CostEstimate(
            flops=2 * B_pad * H * D_pad,
            transcendentals=0,
            bytes_accessed=B_pad * x_row + w_bytes + b_bytes + B_pad * o_row,
        )

        out_full = pl.pallas_call(
            _fused_heads_kernel,
            grid=(n_tiles,),
            in_specs=[
                pl.BlockSpec((TB, H), lambda i: (i, 0)),      # x tile (native dtype), pipelined
                pl.BlockSpec((H, D_pad), lambda i: (0, 0)),   # fused bf16 weights, resident
                pl.BlockSpec((1, D_pad), lambda i: (0, 0)),   # fused f32 bias, resident
            ],
            out_specs=pl.BlockSpec((TB, D_pad), lambda i: (i, 0)),
            out_shape=jax.ShapeDtypeStruct((B_pad, D_pad), self.out_dtype),
            compiler_params=pltpu.CompilerParams(
                dimension_semantics=("parallel",),
                vmem_limit_bytes=vmem_limit,
            ),
            cost_estimate=cost,
        )(x_p, self.w_fused, self.b_fused)

        # Per-head views of the lane-dense fused output (free layout plumbing).
        return self._split(out_full, B)


def _reference(x, head):
    """Pure-JAX f32 reference of the same forward pass."""
    out = {}
    for name in head.head_names:
        w, b = head.params[name]
        out[name] = x @ w + b
    return out


if __name__ == "__main__":
    key = jax.random.PRNGKey(0)
    key, xk1, xk2, xk3, pk = jax.random.split(key, 5)

    H = 32
    head_dims = {"loc": 16, "log_scale": 16, "value": 8}

    head = CompositeHeadPallas(head_dims, H, pk)

    def check(h, x, out):
        ref = _reference(x, h)
        for name in head_dims:
            assert out[name].shape == ref[name].shape, name
            # Tolerance accounts for bf16 MXU operands + bf16 output (f32 accumulation).
            assert jnp.allclose(out[name].astype(jnp.float32), ref[name],
                                atol=5e-2, rtol=5e-2), name

    # 1) tiny batch (matches the module's typical usage) -> fused-dot fast path.
    x_small = jax.random.normal(xk1, (2, H), jnp.float32)
    out_small = jax.block_until_ready(head(x_small))
    check(head, x_small, out_small)

    # 2) single-tile Pallas path (one grid step, no row padding).
    x_mid = jax.random.normal(xk2, (200, H), jnp.float32)
    out_mid = jax.block_until_ready(head(x_mid))
    check(head, x_mid, out_mid)

    # 3) multi-tile Pallas path with ragged batch: exercises even tile count,
    #    batch-derived TB and minimal row padding.
    head_tiled = CompositeHeadPallas(head_dims, H, pk, max_rows_per_tile=128)
    x_big = jax.random.normal(xk3, (1030, H), jnp.float32)
    out_big = jax.block_until_ready(head_tiled(x_big))
    check(head_tiled, x_big, out_big)

    print("KERNEL_OK")
</pallas_src>

<mosaic_0001>
module attributes {stable_mosaic.version = 11 : i64} {
  func.func @_fused_heads_kernel(%arg0: i32, %arg1: memref<200x32xf32, #tpu.memory_space<vmem>>, %arg2: memref<32x128xbf16, #tpu.memory_space<vmem>>, %arg3: memref<1x128xf32, #tpu.memory_space<vmem>>, %arg4: memref<200x128xbf16, #tpu.memory_space<vmem>>) attributes {dimension_semantics = [#tpu.dimension_semantics<parallel>], iteration_bounds = array<i64: 1>, scalar_prefetch = 0 : i64, scratch_operands = 0 : i64, tpu.core_type = #tpu.core_type<tc>, window_params = [{transform_indices = @transform_0, window_bounds = array<i64: 200, 32>}, {pipeline_mode = #tpu.pipeline_mode<synchronous>, transform_indices = @transform_1, window_bounds = array<i64: 32, 128>}, {pipeline_mode = #tpu.pipeline_mode<synchronous>, transform_indices = @transform_2, window_bounds = array<i64: 1, 128>}, {transform_indices = @transform_3, window_bounds = array<i64: 200, 128>}]} {
    %c0 = arith.constant 0 : index
    %c0_0 = arith.constant 0 : index
    %0 = vector.load %arg1[%c0, %c0_0] : memref<200x32xf32, #tpu.memory_space<vmem>>, vector<200x32xf32>
    %1 = arith.truncf %0 : vector<200x32xf32> to vector<200x32xbf16>
    %c0_1 = arith.constant 0 : index
    %c0_2 = arith.constant 0 : index
    %2 = vector.load %arg2[%c0_1, %c0_2] : memref<32x128xbf16, #tpu.memory_space<vmem>>, vector<32x128xbf16>
    %cst = arith.constant dense<0.000000e+00> : vector<200x128xf32>
    %3 = tpu.matmul %1, %2, %cst {dimension_numbers = #tpu.dot_dimension_numbers<[1], [0], [0], [1], [0, 0, 1, 1], [], []>} : vector<200x32xbf16>, vector<32x128xbf16>, vector<200x128xf32> -> vector<200x128xf32>
    %c0_3 = arith.constant 0 : index
    %c0_4 = arith.constant 0 : index
    %4 = vector.load %arg3[%c0_3, %c0_4] : memref<1x128xf32, #tpu.memory_space<vmem>>, vector<1x128xf32>
    %5 = vector.broadcast %4 : vector<1x128xf32> to vector<200x128xf32>
    %6 = arith.addf %3, %5 : vector<200x128xf32>
    %7 = arith.truncf %6 : vector<200x128xf32> to vector<200x128xbf16>
    %c0_5 = arith.constant 0 : index
    %c0_6 = arith.constant 0 : index
    %8 = vector.load %arg4[%c0_5, %c0_6] : memref<200x128xbf16, #tpu.memory_space<vmem>>, vector<200x128xbf16>
    tpu.vector_store %arg4[%c0_5, %c0_6], %7 {strides = array<i32>} : memref<200x128xbf16, #tpu.memory_space<vmem>>, vector<200x128xbf16>,
    return
  }
  func.func @transform_0(%arg0: i32) -> (i32, i32) {
    %c0_i32 = arith.constant 0 : i32
    %c0_i32_0 = arith.constant 0 : i32
    return %arg0, %c0_i32 : i32, i32
  }
  func.func @transform_1(%arg0: i32) -> (i32, i32) {
    %c0_i32 = arith.constant 0 : i32
    %c0_i32_0 = arith.constant 0 : i32
    %c0_i32_1 = arith.constant 0 : i32
    return %c0_i32, %c0_i32_0 : i32, i32
  }
  func.func @transform_2(%arg0: i32) -> (i32, i32) {
    %c0_i32 = arith.constant 0 : i32
    %c0_i32_0 = arith.constant 0 : i32
    %c0_i32_1 = arith.constant 0 : i32
    return %c0_i32, %c0_i32_0 : i32, i32
  }
  func.func @transform_3(%arg0: i32) -> (i32, i32) {
    %c0_i32 = arith.constant 0 : i32
    %c0_i32_0 = arith.constant 0 : i32
    return %arg0, %c0_i32 : i32, i32
  }
}

</mosaic_0001>

<llo_original>
// kernel: tpu_custom_call.1
$region0: #{tpu_custom_call.1}
  #allocation0 [shape = 'u32[]', space=smem, size = 0x4, offset = 0x4, fixed_abs, tag = 'smem constant byte address 0x4 - core index']
  #allocation1 [shape = 'u32[144,128]{1,0:T(1,128)}', space=vmem, size = 0x12000, scoped, tag = 'internal scratch']
  %s0 = inlined_call_operand.vmem [shape: f32[200,32], index: 0, kind: input, shape index: {}]
  %s1 = inlined_call_operand.vmem [shape: bf16[32,128], index: 1, kind: input, shape index: {}]
  %s2 = inlined_call_operand.vmem [shape: f32[1,128], index: 2, kind: input, shape index: {}]
  %s3 = inlined_call_operand.hbm [shape: bf16[200,128], index: 3, kind: output, shape index: {}]
  %s4 = sld [smem:[#allocation0]]
  $region22: #{tpu_custom_call.1} parent=0
    _
  %s6 = ssub.s32 1, %s4
  %s7 = scalar_select 0, %s6, %s4
  $region1: #{tpu_custom_call.1} parent=0
    #allocation2 [shape = 'u8[51200]{0}', space=vmem, size = 0xc800, scoped, tag = 'output window, operand 0, single buffered']
    #allocation3 [shape = 's32[1]{0}', space=sflag, size = 0x4, scoped, tag = 'scoped memory for tpu_custom_call.1']
    %8 = vsyncpa [#allocation3], 0
    // Predicated region
    $region2: #{tpu_custom_call.1} parent=1 // pred_check
      _
    $region3: #{tpu_custom_call.1} parent=1 // pred_check_branch
      %10 = sbr.rel (0) target = $region5
    $region4: #{tpu_custom_call.1} parent=1 // pred_region
      _
    $region5: #{tpu_custom_call.1} parent=1 // pred_fallthru
      _
    // Predicated region
    $region6: #{tpu_custom_call.1} parent=1 // pred_check
      _
    $region7: #{tpu_custom_call.1} parent=1 // pred_check_branch
      %12 = sbr.rel (0) target = $region9
    $region8: #{tpu_custom_call.1} parent=1 // pred_region
      _
    $region9: #{tpu_custom_call.1} parent=1 // pred_fallthru
      _
    // Predicated region
    $region10: #{tpu_custom_call.1} parent=1 // pred_check
      _
    $region11: #{tpu_custom_call.1} parent=1 // pred_check_branch
      %14 = sbr.rel (0) target = $region13
    $region12: #{tpu_custom_call.1} parent=1 // pred_region
      _
    $region13: #{tpu_custom_call.1} parent=1 // pred_fallthru
      _
    %v16 = vld [vmem:[%s0] sm:$0xff]
    %v17 = vld [vmem:[%s0 + $0x8] sm:$0xff]
    %v18 = vld [vmem:[%s0 + $0x10] sm:$0xff]
    %v19 = vld [vmem:[%s0 + $0x18] sm:$0xff]
    %v20 = vld [vmem:[%s0 + $0x20] sm:$0xff]
    %v21 = vld [vmem:[%s0 + $0x28] sm:$0xff]
    %v22 = vld [vmem:[%s0 + $0x30] sm:$0xff]
    %v23 = vld [vmem:[%s0 + $0x38] sm:$0xff]
    %v24 = vld [vmem:[%s0 + $0x40] sm:$0xff]
    %v25 = vld [vmem:[%s0 + $0x48] sm:$0xff]
    %v26 = vld [vmem:[%s0 + $0x50] sm:$0xff]
    %v27 = vld [vmem:[%s0 + $0x58] sm:$0xff]
    %v28 = vld [vmem:[%s0 + $0x60] sm:$0xff]
    %v29 = vld [vmem:[%s0 + $0x68] sm:$0xff]
    %v30 = vld [vmem:[%s0 + $0x70] sm:$0xff]
    %v31 = vld [vmem:[%s0 + $0x78] sm:$0xff]
    %v32 = vld [vmem:[%s0 + $0x80] sm:$0xff]
    %v33 = vld [vmem:[%s0 + $0x88] sm:$0xff]
    %v34 = vld [vmem:[%s0 + $0x90] sm:$0xff]
    %v35 = vld [vmem:[%s0 + $0x98] sm:$0xff]
    %v36 = vld [vmem:[%s0 + $0xa0] sm:$0xff]
    %v37 = vld [vmem:[%s0 + $0xa8] sm:$0xff]
    %v38 = vld [vmem:[%s0 + $0xb0] sm:$0xff]
    %v39 = vld [vmem:[%s0 + $0xb8] sm:$0xff]
    %v40 = vld [vmem:[%s0 + $0xc0] sm:$0xff]
    %v41 = vpack.c.bf16 %v17, %v16
    %v42 = vpack.c.bf16 %v19, %v18
    %v43 = vpack.c.bf16 %v21, %v20
    %v44 = vpack.c.bf16 %v23, %v22
    %v45 = vpack.c.bf16 %v25, %v24
    %v46 = vpack.c.bf16 %v27, %v26
    %v47 = vpack.c.bf16 %v29, %v28
    %v48 = vpack.c.bf16 %v31, %v30
    %v49 = vpack.c.bf16 %v33, %v32
    %v50 = vpack.c.bf16 %v35, %v34
    %v51 = vpack.c.bf16 %v37, %v36
    %v52 = vpack.c.bf16 %v39, %v38
    %v53 = vpack.c.bf16 %v40, %v40
    %v54 = vld [vmem:[%s1] sm:$0xf]
    %v55 = vld [vmem:[%s1 + $0x4] sm:$0xf]
    %v56 = vld [vmem:[%s1 + $0x8] sm:$0xf]
    %v57 = vld [vmem:[%s1 + $0xc] sm:$0xf]
    %v58 = vld [vmem:[%s2] sm:$0x1]
    %v60 = vlaneseq
    %v61 = vshrl.u32 %v60, 7
    %v62 = vsub.s32 0, %v61
    %v63 = vrot.slane %v58, %v62
    %v69 = vunpack.c.l.b16 %v54
    %v70 = vunpack.c.l.b16 %v55
    %v71 = vunpack.c.l.b16 %v56
    %v72 = vunpack.c.l.b16 %v57
    %v73 = vpack.c.b16 %v70, %v69
    %v74 = vpack.c.b16 %v72, %v71
    %vm77 = vcmask 261120
    %v79 = vsel %vm77, %v41, 0
    %v82 = vsel %vm77, %v42, 0
    %v85 = vsel %vm77, %v43, 0
    %v88 = vsel %vm77, %v44, 0
    %v91 = vsel %vm77, %v45, 0
    %v94 = vsel %vm77, %v46, 0
    %v97 = vsel %vm77, %v47, 0
    %v100 = vsel %vm77, %v48, 0
    %v103 = vsel %vm77, %v49, 0
    %v106 = vsel %vm77, %v50, 0
    %v109 = vsel %vm77, %v51, 0
    %v112 = vsel %vm77, %v52, 0
    %v115 = vsel %vm77, %v53, 0
    %117 = vmatprep.subr.bf16.mxu0 0
    %118 = vmatpush1.bf16.msra.mxu0 0
    %119 = vmatprep.subr.bf16.mxu0 0
    %120 = vmatpush1.bf16.msra.mxu0 0
    %121 = vmatprep.subr.bf16.mxu0 0
    %122 = vmatpush1.bf16.msra.mxu0 0
    %123 = vmatprep.subr.bf16.mxu0 0
    %124 = vmatpush1.bf16.msra.mxu0 0
    %125 = vmatprep.subr.bf16.mxu0 0
    %126 = vmatpush1.bf16.msra.mxu0 0
    %127 = vmatprep.subr.bf16.mxu0 0
    %128 = vmatpush1.bf16.msra.mxu0 0
    %129 = vmatprep.subr.bf16.mxu0 0
    %130 = vmatpush1.bf16.msra.mxu0 %v74
    %131 = vmatprep.subr.bf16.mxu0 0
    %132 = vmatpush1.bf16.msra.mxu0 %v73
    %133 = vmatprep.subr.bf16.mxu0 0
    %134 = vmatpush2.bf16.msra.mxu0 0
    %135 = vmatprep.subr.bf16.mxu0 0
    %136 = vmatpush2.bf16.msra.mxu0 0
    %137 = vmatprep.subr.bf16.mxu0 0
    %138 = vmatpush2.bf16.msra.mxu0 0
    %139 = vmatprep.subr.bf16.mxu0 0
    %140 = vmatpush2.bf16.msra.mxu0 0
    %141 = vmatprep.subr.bf16.mxu0 0
    %142 = vmatpush2.bf16.msra.mxu0 0
    %143 = vmatprep.subr.bf16.mxu0 0
    %144 = vmatpush2.bf16.msra.mxu0 0
    %145 = vmatprep.subr.bf16.mxu0 0
    %146 = vmatpush2.bf16.msra.mxu0 0
    %147 = vmatprep.subr.bf16.mxu0 0
    %148 = vmatpush2.bf16.msra.mxu0 0
    %149 = vmatprep.mubr.bf16.mxu0 0
    %150 = vmatmul.mubr.bf16.gmra.mxu0 %v79
    %v151 = vpop.f32.mrf.mxu0
    %v152 = vadd.f32 %v63, %v151
    %v153 = vpop.f32.mrf.mxu0
    %v154 = vpop.f32.mrf.mxu0
    %v155 = vadd.f32 %v63, %v154
    %v156 = vpop.f32.mrf.mxu0
    %157 = vmatprep.mubr.bf16.mxu0 0
    %158 = vmatmul.mubr.bf16.gmra.mxu0 %v82
    %v159 = vpop.f32.mrf.mxu0
    %v160 = vadd.f32 %v63, %v159
    %v161 = vpop.f32.mrf.mxu0
    %v162 = vpop.f32.mrf.mxu0
    %v163 = vadd.f32 %v63, %v162
    %v164 = vpop.f32.mrf.mxu0
    %165 = vmatprep.mubr.bf16.mxu0 0
    %166 = vmatmul.mubr.bf16.gmra.mxu0 %v85
    %v167 = vpop.f32.mrf.mxu0
    %v168 = vadd.f32 %v63, %v167
    %v169 = vpop.f32.mrf.mxu0
    %v170 = vpop.f32.mrf.mxu0
    %v171 = vadd.f32 %v63, %v170
    %v172 = vpop.f32.mrf.mxu0
    %173 = vmatprep.mubr.bf16.mxu0 0
    %174 = vmatmul.mubr.bf16.gmra.mxu0 %v88
    %v175 = vpop.f32.mrf.mxu0
    %v176 = vadd.f32 %v63, %v175
    %v177 = vpop.f32.mrf.mxu0
    %v178 = vpop.f32.mrf.mxu0
    %v179 = vadd.f32 %v63, %v178
    %v180 = vpop.f32.mrf.mxu0
    %181 = vmatprep.mubr.bf16.mxu0 0
    %182 = vmatmul.mubr.bf16.gmra.mxu0 %v91
    %v183 = vpop.f32.mrf.mxu0
    %v184 = vadd.f32 %v63, %v183
    %v185 = vpop.f32.mrf.mxu0
    %v186 = vpop.f32.mrf.mxu0
    %v187 = vadd.f32 %v63, %v186
    %v188 = vpop.f32.mrf.mxu0
    %189 = vmatprep.mubr.bf16.mxu0 0
    %190 = vmatmul.mubr.bf16.gmra.mxu0 %v94
    %v191 = vpop.f32.mrf.mxu0
    %v192 = vadd.f32 %v63, %v191
    %v193 = vpop.f32.mrf.mxu0
    %v194 = vpop.f32.mrf.mxu0
    %v195 = vadd.f32 %v63, %v194
    %v196 = vpop.f32.mrf.mxu0
    %197 = vmatprep.mubr.bf16.mxu0 0
    %198 = vmatmul.mubr.bf16.gmra.mxu0 %v97
    %v199 = vpop.f32.mrf.mxu0
    %v200 = vadd.f32 %v63, %v199
    %v201 = vpop.f32.mrf.mxu0
    %v202 = vpop.f32.mrf.mxu0
    %v203 = vadd.f32 %v63, %v202
    %v204 = vpop.f32.mrf.mxu0
    %205 = vmatprep.mubr.bf16.mxu0 0
    %206 = vmatmul.mubr.bf16.gmra.mxu0 %v100
    %v207 = vpop.f32.mrf.mxu0
    %v208 = vadd.f32 %v63, %v207
    %v209 = vpop.f32.mrf.mxu0
    %v210 = vpop.f32.mrf.mxu0
    %v211 = vadd.f32 %v63, %v210
    %v212 = vpop.f32.mrf.mxu0
    %213 = vmatprep.mubr.bf16.mxu0 0
    %214 = vmatmul.mubr.bf16.gmra.mxu0 %v103
    %v215 = vpop.f32.mrf.mxu0
    %v216 = vadd.f32 %v63, %v215
    %v217 = vpop.f32.mrf.mxu0
    %v218 = vpop.f32.mrf.mxu0
    %v219 = vadd.f32 %v63, %v218
    %v220 = vpop.f32.mrf.mxu0
    %221 = vmatprep.mubr.bf16.mxu0 0
    %222 = vmatmul.mubr.bf16.gmra.mxu0 %v106
    %v223 = vpop.f32.mrf.mxu0
    %v224 = vadd.f32 %v63, %v223
    %v225 = vpop.f32.mrf.mxu0
    %v226 = vpop.f32.mrf.mxu0
    %v227 = vadd.f32 %v63, %v226
    %v228 = vpop.f32.mrf.mxu0
    %229 = vmatprep.mubr.bf16.mxu0 0
    %230 = vmatmul.mubr.bf16.gmra.mxu0 %v109
    %v231 = vpop.f32.mrf.mxu0
    %v232 = vadd.f32 %v63, %v231
    %v233 = vpop.f32.mrf.mxu0
    %v234 = vpop.f32.mrf.mxu0
    %v235 = vadd.f32 %v63, %v234
    %v236 = vpop.f32.mrf.mxu0
    %237 = vmatprep.mubr.bf16.mxu0 0
    %238 = vmatmul.mubr.bf16.gmra.mxu0 %v112
    %v239 = vpop.f32.mrf.mxu0
    %v240 = vadd.f32 %v63, %v239
    %v241 = vpop.f32.mrf.mxu0
    %v242 = vpop.f32.mrf.mxu0
    %v243 = vadd.f32 %v63, %v242
    %v244 = vpop.f32.mrf.mxu0
    %245 = vmatprep.mubr.bf16.mxu0 0
    %246 = vmatmul.mubr.bf16.gmra.mxu0 %v115
    %v247 = vpop.f32.mrf.mxu0
    %v248 = vadd.f32 %v63, %v247
    %v249 = vpop.f32.mrf.mxu0
    %v250 = vpop.f32.mrf.mxu0
    %v251 = vpop.f32.mrf.mxu0
    %252 = vdwg.mxu0
    %v253 = vpack.c.bf16 %v155, %v152
    %v254 = vpack.c.bf16 %v163, %v160
    %v255 = vpack.c.bf16 %v171, %v168
    %v256 = vpack.c.bf16 %v179, %v176
    %v257 = vpack.c.bf16 %v187, %v184
    %v258 = vpack.c.bf16 %v195, %v192
    %v259 = vpack.c.bf16 %v203, %v200
    %v260 = vpack.c.bf16 %v211, %v208
    %v261 = vpack.c.bf16 %v219, %v216
    %v262 = vpack.c.bf16 %v227, %v224
    %v263 = vpack.c.bf16 %v235, %v232
    %v264 = vpack.c.bf16 %v243, %v240
    %v265 = vpack.c.bf16 %v248, %v248
    %v279 = vunpack.c.l.b16 %v253
    %v280 = vunpack.c.h.b16 %v253
    %v281 = vunpack.c.l.b16 %v254
    %v282 = vunpack.c.h.b16 %v254
    %v283 = vunpack.c.l.b16 %v255
    %v284 = vunpack.c.h.b16 %v255
    %v285 = vunpack.c.l.b16 %v256
    %v286 = vunpack.c.h.b16 %v256
    %v287 = vunpack.c.l.b16 %v257
    %v288 = vunpack.c.h.b16 %v257
    %v289 = vunpack.c.l.b16 %v258
    %v290 = vunpack.c.h.b16 %v258
    %v291 = vunpack.c.l.b16 %v259
    %v292 = vunpack.c.h.b16 %v259
    %v293 = vunpack.c.l.b16 %v260
    %v294 = vunpack.c.h.b16 %v260
    %v295 = vunpack.c.l.b16 %v261
    %v296 = vunpack.c.h.b16 %v261
    %v297 = vunpack.c.l.b16 %v262
    %v298 = vunpack.c.h.b16 %v262
    %v299 = vunpack.c.l.b16 %v263
    %v300 = vunpack.c.h.b16 %v263
    %v301 = vunpack.c.l.b16 %v264
    %v302 = vunpack.c.h.b16 %v264
    %v303 = vunpack.c.l.b16 %v265
    %v304 = vpack.c.b16 %v279, %v279
    %v305 = vpack.c.b16 %v280, %v280
    %v306 = vpack.c.b16 %v281, %v281
    %v307 = vpack.c.b16 %v282, %v282
    %v308 = vpack.c.b16 %v283, %v283
    %v309 = vpack.c.b16 %v284, %v284
    %v310 = vpack.c.b16 %v285, %v285
    %v311 = vpack.c.b16 %v286, %v286
    %v312 = vpack.c.b16 %v287, %v287
    %v313 = vpack.c.b16 %v288, %v288
    %v314 = vpack.c.b16 %v289, %v289
    %v315 = vpack.c.b16 %v290, %v290
    %v316 = vpack.c.b16 %v291, %v291
    %v317 = vpack.c.b16 %v292, %v292
    %v318 = vpack.c.b16 %v293, %v293
    %v319 = vpack.c.b16 %v294, %v294
    %v320 = vpack.c.b16 %v295, %v295
    %v321 = vpack.c.b16 %v296, %v296
    %v322 = vpack.c.b16 %v297, %v297
    %v323 = vpack.c.b16 %v298, %v298
    %v324 = vpack.c.b16 %v299, %v299
    %v325 = vpack.c.b16 %v300, %v300
    %v326 = vpack.c.b16 %v301, %v301
    %v327 = vpack.c.b16 %v302, %v302
    %v328 = vpack.c.b16 %v303, %v303
    %354 = vst [vmem:[#allocation2] sm:$0xf] %v304
    %355 = vst [vmem:[#allocation2 + $0x4] sm:$0xf] %v305
    %356 = vst [vmem:[#allocation2 + $0x8] sm:$0xf] %v306
    %357 = vst [vmem:[#allocation2 + $0xc] sm:$0xf] %v307
    %358 = vst [vmem:[#allocation2 + $0x10] sm:$0xf] %v308
    %359 = vst [vmem:[#allocation2 + $0x14] sm:$0xf] %v309
    %360 = vst [vmem:[#allocation2 + $0x18] sm:$0xf] %v310
    %361 = vst [vmem:[#allocation2 + $0x1c] sm:$0xf] %v311
    %362 = vst [vmem:[#allocation2 + $0x20] sm:$0xf] %v312
    %363 = vst [vmem:[#allocation2 + $0x24] sm:$0xf] %v313
    %364 = vst [vmem:[#allocation2 + $0x28] sm:$0xf] %v314
    %365 = vst [vmem:[#allocation2 + $0x2c] sm:$0xf] %v315
    %366 = vst [vmem:[#allocation2 + $0x30] sm:$0xf] %v316
    %367 = vst [vmem:[#allocation2 + $0x34] sm:$0xf] %v317
    %368 = vst [vmem:[#allocation2 + $0x38] sm:$0xf] %v318
    %369 = vst [vmem:[#allocation2 + $0x3c] sm:$0xf] %v319
    %370 = vst [vmem:[#allocation2 + $0x40] sm:$0xf] %v320
    %371 = vst [vmem:[#allocation2 + $0x44] sm:$0xf] %v321
    %372 = vst [vmem:[#allocation2 + $0x48] sm:$0xf] %v322
    %373 = vst [vmem:[#allocation2 + $0x4c] sm:$0xf] %v323
    %374 = vst [vmem:[#allocation2 + $0x50] sm:$0xf] %v324
    %375 = vst [vmem:[#allocation2 + $0x54] sm:$0xf] %v325
    %376 = vst [vmem:[#allocation2 + $0x58] sm:$0xf] %v326
    %377 = vst [vmem:[#allocation2 + $0x5c] sm:$0xf] %v327
    %378 = vst [vmem:[#allocation2 + $0x60] sm:$0xf] %v328
    // Predicated region
    $region14: #{tpu_custom_call.1} parent=1 // pred_check
      _
    $region15: #{tpu_custom_call.1} parent=1 // pred_check_branch
      %380 = sbr.rel (0) target = $region17
    $region16: #{tpu_custom_call.1} parent=1 // pred_region
      %s382 = ssub.s32 1600, 1600
      %383 = vsyncadd [#allocation3], %s382
      %s384 = sshll.u32 [#allocation2], 4
      %s385 = int_to_ptr.vmem [resolvable:$true] %s384
      %390 = dma.vmem_to_hbm [thread:$0]  %s385, 1600, %s3, [#allocation3], 64, 64, 4
    $region17: #{tpu_custom_call.1} parent=1 // pred_fallthru
      _
    // Predicated region
    $region18: #{tpu_custom_call.1} parent=1 // pred_check
      _
    $region19: #{tpu_custom_call.1} parent=1 // pred_check_branch
      %392 = sbr.rel (0) target = $region21
    $region20: #{tpu_custom_call.1} parent=1 // pred_region
      %393 = dma.done [#allocation3], 1600
    $region21: #{tpu_custom_call.1} parent=1 // pred_fallthru
      _
    %394 = vsyncpa [#allocation3], 1

</llo_original>
